<compile_context>
chip_gen: v7x
topology: tpu7x:2x2x1
jax: 0.10.0
libtpu: 0.0.40
codegen_flags: <defaults>
</compile_context>

<pallas_src>
import jax
import jax.numpy as jnp
from jax.experimental import pallas as pl
from jax.experimental.pallas import tpu as pltpu

C_IN = 256   # bottleneck input/output channels
C_MID = 64   # bottleneck hidden channels


def bottleneck_kernel(x_ref, w1_ref, w2_ref, w3_ref, o_ref):
    # x_ref : (B, H, W, 256) bf16
    # w1_ref: (256, 64) bf16
    # w2_ref: (3, 192, 64) bf16, leading axis = ky, rows within = (kx, cin)
    # w3_ref: (64, 256) bf16
    # o_ref : (B, H, W, 256) f32 (or bf16 if out_dtype was changed)
    B, H, W, _ = x_ref.shape
    M = B * H * W

    x = x_ref[...]                                    # bf16
    xm = x.reshape(M, C_IN)                           # (M, 256)

    # ---- conv1: 1x1, 256 -> 64, ReLU.  One MXU matmul, f32 accumulate. ----
    # Cast straight to bf16 so the whole im2col build below is half-width.
    h1 = jnp.maximum(
        jnp.dot(xm, w1_ref[...], preferred_element_type=jnp.float32), 0.0
    ).astype(jnp.bfloat16).reshape(B, H, W, C_MID)    # bf16, (B,H,W,64)

    # ---- conv2: 3x3 (padding=1), 64 -> 64 as three accumulated K=192 matmuls
    # (one per ky tap), avoiding the (M,576) concat.  All taps built in bf16. ----
    # kx (W-direction) taps: two shifted copies + zero boundary columns.
    zc = jnp.zeros((B, H, 1, C_MID), jnp.bfloat16)
    h_l = jnp.concatenate([zc, h1[:, :, :W - 1, :]], axis=2)   # kx=0 tap (reads x-1)
    h_r = jnp.concatenate([h1[:, :, 1:, :], zc], axis=2)       # kx=2 tap (reads x+1)
    hx = jnp.concatenate([h_l, h1, h_r], axis=3)               # (B,H,W,192), kx=0,1,2

    # ky (H-direction) taps: shifted copies of hx + zero boundary rows.
    zr = jnp.zeros((B, 1, W, 3 * C_MID), jnp.bfloat16)
    h_t = jnp.concatenate([zr, hx[:, :H - 1, :, :]], axis=1)   # ky=0 tap (reads y-1)
    h_b = jnp.concatenate([hx[:, 1:, :, :], zr], axis=1)       # ky=2 tap (reads y+1)

    acc = jnp.dot(h_t.reshape(M, 3 * C_MID), w2_ref[0],
                  preferred_element_type=jnp.float32)
    acc += jnp.dot(hx.reshape(M, 3 * C_MID), w2_ref[1],
                   preferred_element_type=jnp.float32)
    acc += jnp.dot(h_b.reshape(M, 3 * C_MID), w2_ref[2],
                   preferred_element_type=jnp.float32)
    h2 = jnp.maximum(acc, 0.0).astype(jnp.bfloat16)            # (M, 64)

    # ---- conv3: 1x1, 64 -> 256; residual add + final ReLU in f32. ----
    h3 = jnp.dot(h2, w3_ref[...], preferred_element_type=jnp.float32)
    out = jnp.maximum(h3 + xm.astype(jnp.float32), 0.0)
    o_ref[...] = out.reshape(B, H, W, C_IN).astype(o_ref.dtype)


def _vmem_budget_bytes():
    """~75% of this generation's per-core VMEM (v5e/v6e: 128 MiB, v7x: 64 MiB)."""
    phys = 64 * 1024 * 1024                      # conservative v7x-safe fallback
    try:
        info = pltpu.get_tpu_info()
        phys = int(getattr(info, "vmem_capacity_bytes", phys) or phys)
    except Exception:
        pass
    return (phys * 3) // 4


def _pick_batch_tile(n, h, w, vmem_budget):
    """Images per grid step.

    Accounts for BOTH the double-buffered I/O blocks and the in-kernel im2col
    intermediates (the review's v7x OOM concern), and always keeps >= 2 grid
    steps when N > 1 so both v7x TensorCores get work under
    dimension_semantics=("parallel",)."""
    px = h * w
    io_bytes = px * C_IN * (2 * 2 + 4 * 2)       # bf16 in + f32 out, double-buffered
    scratch_bytes = px * (
        3 * C_MID * 2 * 3                        # hx + h_t + h_b (bf16)
        + C_MID * 2 * 3                          # h1 + h_l + h_r (bf16)
        + C_MID * 4                              # f32 conv2 accumulator
        + C_IN * 4 * 2                           # h3 + out in f32
    )
    bytes_per_image = io_bytes + scratch_bytes
    max_b = max(1, vmem_budget // bytes_per_image)

    best = 1
    for b in range(1, n + 1):
        if n % b != 0:
            continue
        if b > max_b:
            break
        if n > 1 and (n // b) < 2:
            break                                # keep >= 2 grid steps for v7x megacore
        best = b
    return best


def bottleneck_forward(x_nchw, w1_torch, w2_torch, w3_torch, out_dtype=jnp.float32):
    """x_nchw: (N, 256, H, W) float32. Weights in PyTorch Conv2d layout (Cout, Cin, kh, kw),
    bias=False as in the reference module."""
    N, C, H, W = x_nchw.shape
    assert C == C_IN

    vmem_budget = _vmem_budget_bytes()
    b_tile = _pick_batch_tile(N, H, W, vmem_budget)

    # Cast to bf16 BEFORE the NCHW -> NHWC relayout so the transpose moves half
    # the HBM bytes (the kernel itself is bandwidth-bound).
    # TODO(synk): if the surrounding model can stay NHWC, drop both transposes.
    x = jnp.transpose(x_nchw.astype(jnp.bfloat16), (0, 2, 3, 1))

    # Repack weights for matmul form (bf16 MXU operands, f32 accumulation).
    w1 = jnp.transpose(w1_torch[:, :, 0, 0], (1, 0)).astype(jnp.bfloat16)       # (256, 64)
    # (Cout,Cin,kh,kw) -> (kh,kw,cin,cout) -> (ky, kx*cin, cout) = (3, 192, 64)
    w2 = jnp.transpose(w2_torch, (2, 3, 1, 0)).reshape(3, 3 * C_MID, C_MID)
    w2 = w2.astype(jnp.bfloat16)
    w3 = jnp.transpose(w3_torch[:, :, 0, 0], (1, 0)).astype(jnp.bfloat16)       # (64, 256)

    out_nhwc = pl.pallas_call(
        bottleneck_kernel,
        out_shape=jax.ShapeDtypeStruct((N, H, W, C_IN), out_dtype),
        grid_spec=pltpu.PrefetchScalarGridSpec(
            num_scalar_prefetch=0,
            grid=(N // b_tile,),
            in_specs=[
                pl.BlockSpec((b_tile, H, W, C_IN), lambda b: (b, 0, 0, 0)),
                pl.BlockSpec((C_IN, C_MID), lambda b: (0, 0)),
                pl.BlockSpec((3, 3 * C_MID, C_MID), lambda b: (0, 0, 0)),
                pl.BlockSpec((C_MID, C_IN), lambda b: (0, 0)),
            ],
            out_specs=pl.BlockSpec((b_tile, H, W, C_IN), lambda b: (b, 0, 0, 0)),
        ),
        compiler_params=pltpu.CompilerParams(
            dimension_semantics=("parallel",),
            vmem_limit_bytes=int(vmem_budget),   # ~96 MiB on v5e/v6e, ~48 MiB on v7x
        ),
    )(x, w1, w2, w3)

    # NHWC -> NCHW to match the PyTorch module's output convention.
    return jnp.transpose(out_nhwc, (0, 3, 1, 2))


def _reference(x_nchw, w1, w2, w3):
    """Pure-JAX f32 reference (lax conv, NCHW) for correctness check."""
    dn = jax.lax.conv_dimension_numbers(x_nchw.shape, w1.shape, ("NCHW", "OIHW", "NCHW"))
    h = jax.lax.conv_general_dilated(x_nchw, w1, (1, 1), "VALID", dimension_numbers=dn)
    h = jnp.maximum(h, 0.0)
    dn2 = jax.lax.conv_dimension_numbers(h.shape, w2.shape, ("NCHW", "OIHW", "NCHW"))
    h = jax.lax.conv_general_dilated(h, w2, (1, 1), ((1, 1), (1, 1)), dimension_numbers=dn2)
    h = jnp.maximum(h, 0.0)
    dn3 = jax.lax.conv_dimension_numbers(h.shape, w3.shape, ("NCHW", "OIHW", "NCHW"))
    h = jax.lax.conv_general_dilated(h, w3, (1, 1), "VALID", dimension_numbers=dn3)
    return jnp.maximum(h + x_nchw, 0.0)


if __name__ == "__main__":
    key = jax.random.PRNGKey(0)
    k_x, k_w1, k_w2, k_w3 = jax.random.split(key, 4)

    N, H, W = 2, 8, 8
    x = jax.random.normal(k_x, (N, C_IN, H, W), dtype=jnp.float32)

    # Deterministic synthetic weights in PyTorch Conv2d layout (Cout, Cin, kh, kw), bias=False.
    w1 = jax.random.normal(k_w1, (C_MID, C_IN, 1, 1), dtype=jnp.float32) * 0.05
    w2 = jax.random.normal(k_w2, (C_MID, C_MID, 3, 3), dtype=jnp.float32) * 0.05
    w3 = jax.random.normal(k_w3, (C_IN, C_MID, 1, 1), dtype=jnp.float32) * 0.05

    out = jax.block_until_ready(bottleneck_forward(x, w1, w2, w3))
    ref = jax.block_until_ready(_reference(x, w1, w2, w3))

    assert out.shape == (N, C_IN, H, W)
    # bf16 matmul operands (and bf16-quantized residual input) vs. f32 reference.
    max_err = jnp.max(jnp.abs(out - ref))
    assert jnp.allclose(out, ref, atol=5e-2, rtol=5e-2), f"mismatch vs reference (max abs err {max_err})"

    print("KERNEL_OK")
</pallas_src>

<mosaic_0001>
module attributes {stable_mosaic.version = 11 : i64} {
  func.func @bottleneck_kernel(%arg0: i32, %arg1: memref<1x8x8x256xbf16, #tpu.memory_space<vmem>>, %arg2: memref<256x64xbf16, #tpu.memory_space<vmem>>, %arg3: memref<3x192x64xbf16, #tpu.memory_space<vmem>>, %arg4: memref<64x256xbf16, #tpu.memory_space<vmem>>, %arg5: memref<1x8x8x256xf32, #tpu.memory_space<vmem>>) attributes {dimension_semantics = [#tpu.dimension_semantics<parallel>], iteration_bounds = array<i64: 2>, scalar_prefetch = 0 : i64, scratch_operands = 0 : i64, tpu.core_type = #tpu.core_type<tc>, window_params = [{transform_indices = @transform_0, window_bounds = array<i64: 1, 8, 8, 256>}, {pipeline_mode = #tpu.pipeline_mode<synchronous>, transform_indices = @transform_1, window_bounds = array<i64: 256, 64>}, {pipeline_mode = #tpu.pipeline_mode<synchronous>, transform_indices = @transform_2, window_bounds = array<i64: 3, 192, 64>}, {pipeline_mode = #tpu.pipeline_mode<synchronous>, transform_indices = @transform_3, window_bounds = array<i64: 64, 256>}, {transform_indices = @transform_4, window_bounds = array<i64: 1, 8, 8, 256>}]} {
    %c0 = arith.constant 0 : index
    %c0_0 = arith.constant 0 : index
    %c0_1 = arith.constant 0 : index
    %c0_2 = arith.constant 0 : index
    %0 = vector.load %arg1[%c0, %c0_0, %c0_1, %c0_2] : memref<1x8x8x256xbf16, #tpu.memory_space<vmem>>, vector<1x8x8x256xbf16>
    %1 = vector.shape_cast %0 : vector<1x8x8x256xbf16> to vector<64x256xbf16>
    %c0_3 = arith.constant 0 : index
    %c0_4 = arith.constant 0 : index
    %2 = vector.load %arg2[%c0_3, %c0_4] : memref<256x64xbf16, #tpu.memory_space<vmem>>, vector<256x64xbf16>
    %cst = arith.constant dense<0.000000e+00> : vector<64x64xf32>
    %3 = tpu.matmul %1, %2, %cst {dimension_numbers = #tpu.dot_dimension_numbers<[1], [0], [0], [1], [0, 0, 1, 1], [], []>} : vector<64x256xbf16>, vector<256x64xbf16>, vector<64x64xf32> -> vector<64x64xf32>
    %cst_5 = arith.constant 0.000000e+00 : f32
    %4 = vector.broadcast %cst_5 : f32 to vector<64x64xf32>
    %5 = arith.maximumf %3, %4 : vector<64x64xf32>
    %6 = arith.truncf %5 : vector<64x64xf32> to vector<64x64xbf16>
    %7 = vector.shape_cast %6 : vector<64x64xbf16> to vector<1x8x8x64xbf16>
    %cst_6 = arith.constant 0.000000e+00 : bf16
    %8 = vector.broadcast %cst_6 : bf16 to vector<1x8x1x64xbf16>
    %9 = vector.extract_strided_slice %7 {offsets = [0, 0, 0, 0], sizes = [1, 8, 7, 64], strides = [1, 1, 1, 1]} : vector<1x8x8x64xbf16> to vector<1x8x7x64xbf16>
    %10 = tpu.concatenate %8, %9 in 2 : vector<1x8x1x64xbf16>, vector<1x8x7x64xbf16> -> vector<1x8x8x64xbf16>
    %11 = vector.extract_strided_slice %7 {offsets = [0, 0, 1, 0], sizes = [1, 8, 7, 64], strides = [1, 1, 1, 1]} : vector<1x8x8x64xbf16> to vector<1x8x7x64xbf16>
    %12 = tpu.concatenate %11, %8 in 2 : vector<1x8x7x64xbf16>, vector<1x8x1x64xbf16> -> vector<1x8x8x64xbf16>
    %13 = tpu.concatenate %10, %7, %12 in 3 : vector<1x8x8x64xbf16>, vector<1x8x8x64xbf16>, vector<1x8x8x64xbf16> -> vector<1x8x8x192xbf16>
    %cst_7 = arith.constant 0.000000e+00 : bf16
    %14 = vector.broadcast %cst_7 : bf16 to vector<1x1x8x192xbf16>
    %15 = vector.extract_strided_slice %13 {offsets = [0, 0, 0, 0], sizes = [1, 7, 8, 192], strides = [1, 1, 1, 1]} : vector<1x8x8x192xbf16> to vector<1x7x8x192xbf16>
    %16 = tpu.concatenate %14, %15 in 1 : vector<1x1x8x192xbf16>, vector<1x7x8x192xbf16> -> vector<1x8x8x192xbf16>
    %17 = vector.extract_strided_slice %13 {offsets = [0, 1, 0, 0], sizes = [1, 7, 8, 192], strides = [1, 1, 1, 1]} : vector<1x8x8x192xbf16> to vector<1x7x8x192xbf16>
    %18 = tpu.concatenate %17, %14 in 1 : vector<1x7x8x192xbf16>, vector<1x1x8x192xbf16> -> vector<1x8x8x192xbf16>
    %19 = vector.shape_cast %16 : vector<1x8x8x192xbf16> to vector<64x192xbf16>
    %c0_8 = arith.constant 0 : index
    %c0_9 = arith.constant 0 : index
    %c0_10 = arith.constant 0 : index
    %20 = vector.load %arg3[%c0_8, %c0_9, %c0_10] : memref<3x192x64xbf16, #tpu.memory_space<vmem>>, vector<1x192x64xbf16>
    %21 = vector.shape_cast %20 : vector<1x192x64xbf16> to vector<192x64xbf16>
    %cst_11 = arith.constant dense<0.000000e+00> : vector<64x64xf32>
    %22 = tpu.matmul %19, %21, %cst_11 {dimension_numbers = #tpu.dot_dimension_numbers<[1], [0], [0], [1], [0, 0, 1, 1], [], []>} : vector<64x192xbf16>, vector<192x64xbf16>, vector<64x64xf32> -> vector<64x64xf32>
    %23 = vector.shape_cast %13 : vector<1x8x8x192xbf16> to vector<64x192xbf16>
    %c1 = arith.constant 1 : index
    %c0_12 = arith.constant 0 : index
    %c0_13 = arith.constant 0 : index
    %24 = vector.load %arg3[%c1, %c0_12, %c0_13] : memref<3x192x64xbf16, #tpu.memory_space<vmem>>, vector<1x192x64xbf16>
    %25 = vector.shape_cast %24 : vector<1x192x64xbf16> to vector<192x64xbf16>
    %cst_14 = arith.constant dense<0.000000e+00> : vector<64x64xf32>
    %26 = tpu.matmul %23, %25, %cst_14 {dimension_numbers = #tpu.dot_dimension_numbers<[1], [0], [0], [1], [0, 0, 1, 1], [], []>} : vector<64x192xbf16>, vector<192x64xbf16>, vector<64x64xf32> -> vector<64x64xf32>
    %27 = arith.addf %22, %26 : vector<64x64xf32>
    %28 = vector.shape_cast %18 : vector<1x8x8x192xbf16> to vector<64x192xbf16>
    %c2 = arith.constant 2 : index
    %c0_15 = arith.constant 0 : index
    %c0_16 = arith.constant 0 : index
    %29 = vector.load %arg3[%c2, %c0_15, %c0_16] : memref<3x192x64xbf16, #tpu.memory_space<vmem>>, vector<1x192x64xbf16>
    %30 = vector.shape_cast %29 : vector<1x192x64xbf16> to vector<192x64xbf16>
    %cst_17 = arith.constant dense<0.000000e+00> : vector<64x64xf32>
    %31 = tpu.matmul %28, %30, %cst_17 {dimension_numbers = #tpu.dot_dimension_numbers<[1], [0], [0], [1], [0, 0, 1, 1], [], []>} : vector<64x192xbf16>, vector<192x64xbf16>, vector<64x64xf32> -> vector<64x64xf32>
    %32 = arith.addf %27, %31 : vector<64x64xf32>
    %cst_18 = arith.constant 0.000000e+00 : f32
    %33 = vector.broadcast %cst_18 : f32 to vector<64x64xf32>
    %34 = arith.maximumf %32, %33 : vector<64x64xf32>
    %35 = arith.truncf %34 : vector<64x64xf32> to vector<64x64xbf16>
    %c0_19 = arith.constant 0 : index
    %c0_20 = arith.constant 0 : index
    %36 = vector.load %arg4[%c0_19, %c0_20] : memref<64x256xbf16, #tpu.memory_space<vmem>>, vector<64x256xbf16>
    %cst_21 = arith.constant dense<0.000000e+00> : vector<64x256xf32>
    %37 = tpu.matmul %35, %36, %cst_21 {dimension_numbers = #tpu.dot_dimension_numbers<[1], [0], [0], [1], [0, 0, 1, 1], [], []>} : vector<64x64xbf16>, vector<64x256xbf16>, vector<64x256xf32> -> vector<64x256xf32>
    %38 = arith.extf %1 : vector<64x256xbf16> to vector<64x256xf32>
    %39 = arith.addf %37, %38 : vector<64x256xf32>
    %cst_22 = arith.constant 0.000000e+00 : f32
    %40 = vector.broadcast %cst_22 : f32 to vector<64x256xf32>
    %41 = arith.maximumf %39, %40 : vector<64x256xf32>
    %42 = vector.shape_cast %41 : vector<64x256xf32> to vector<1x8x8x256xf32>
    %c0_23 = arith.constant 0 : index
    %c0_24 = arith.constant 0 : index
    %c0_25 = arith.constant 0 : index
    %c0_26 = arith.constant 0 : index
    %43 = vector.load %arg5[%c0_23, %c0_24, %c0_25, %c0_26] : memref<1x8x8x256xf32, #tpu.memory_space<vmem>>, vector<1x8x8x256xf32>
    tpu.vector_store %arg5[%c0_23, %c0_24, %c0_25, %c0_26], %42 {strides = array<i32>} : memref<1x8x8x256xf32, #tpu.memory_space<vmem>>, vector<1x8x8x256xf32>,
    return
  }
  func.func @transform_0(%arg0: i32) -> (i32, i32, i32, i32) {
    %c0_i32 = arith.constant 0 : i32
    %c0_i32_0 = arith.constant 0 : i32
    %c0_i32_1 = arith.constant 0 : i32
    %c0_i32_2 = arith.constant 0 : i32
    return %arg0, %c0_i32, %c0_i32_0, %c0_i32_1 : i32, i32, i32, i32
  }
  func.func @transform_1(%arg0: i32) -> (i32, i32) {
    %c0_i32 = arith.constant 0 : i32
    %c0_i32_0 = arith.constant 0 : i32
    %c0_i32_1 = arith.constant 0 : i32
    return %c0_i32, %c0_i32_0 : i32, i32
  }
  func.func @transform_2(%arg0: i32) -> (i32, i32, i32) {
    %c0_i32 = arith.constant 0 : i32
    %c0_i32_0 = arith.constant 0 : i32
    %c0_i32_1 = arith.constant 0 : i32
    %c0_i32_2 = arith.constant 0 : i32
    return %c0_i32, %c0_i32_0, %c0_i32_1 : i32, i32, i32
  }
  func.func @transform_3(%arg0: i32) -> (i32, i32) {
    %c0_i32 = arith.constant 0 : i32
    %c0_i32_0 = arith.constant 0 : i32
    %c0_i32_1 = arith.constant 0 : i32
    return %c0_i32, %c0_i32_0 : i32, i32
  }
  func.func @transform_4(%arg0: i32) -> (i32, i32, i32, i32) {
    %c0_i32 = arith.constant 0 : i32
    %c0_i32_0 = arith.constant 0 : i32
    %c0_i32_1 = arith.constant 0 : i32
    %c0_i32_2 = arith.constant 0 : i32
    return %arg0, %c0_i32, %c0_i32_0, %c0_i32_1 : i32, i32, i32, i32
  }
}

</mosaic_0001>

<llo_original>
// kernel: tpu_custom_call.1
$region0: #{tpu_custom_call.1}
  #allocation0 [shape = 'u32[]', space=smem, size = 0x4, offset = 0x4, fixed_abs, tag = 'smem constant byte address 0x4 - core index']
  #allocation1 [shape = 'u32[144,128]{1,0:T(1,128)}', space=vmem, size = 0x12000, scoped, tag = 'internal scratch']
  %s0 = inlined_call_operand.vmem [shape: bf16[2,8,8,256], index: 0, kind: input, shape index: {}]
  %s1 = inlined_call_operand.vmem [shape: bf16[256,64], index: 1, kind: input, shape index: {}]
  %s2 = inlined_call_operand.vmem [shape: bf16[3,192,64], index: 2, kind: input, shape index: {}]
  %s3 = inlined_call_operand.vmem [shape: bf16[64,256], index: 3, kind: input, shape index: {}]
  %s4 = inlined_call_operand.hbm [shape: f32[2,8,8,256], index: 4, kind: output, shape index: {}]
  %s5 = sld [smem:[#allocation0]]
  $region49: #{tpu_custom_call.1} parent=0
    _
  %s7 = ssub.s32 1, %s5
  %s8 = scalar_select 0, %s7, %s5
  $region1: #{tpu_custom_call.1} parent=0
    #allocation2 [shape = 'u8[131072]{0}', space=vmem, size = 0x20000, scoped, tag = 'output window, operand 0']
    #allocation3 [shape = 's32[2]{0}', space=sflag, size = 0x8, scoped, tag = 'scoped memory for tpu_custom_call.1']
    %9 = vsyncpa [#allocation3], 0
    %s10 = scalar_lea.sflag [#allocation3], 1
    %11 = vsyncpa %s10, 0
    loop: start=0, step=1, limit=4
    $region2: #{tpu_custom_call.1} parent=1 // loop_pre_header
      _
    $region3: #{tpu_custom_call.1} parent=1 // loop_header
      %s13 = sphi 0, %s17
      %p14 = scmp.ge.s32.totalorder %s13, 4
      %s23 = sphi 0, %s25
      %s26 = sphi 0, %s23
      %s27 = sphi 0, %s26
      %s43 = sphi 0, %s27
      %s47 = sphi 0, %s47
      %s49 = sphi 0, %s47
      %s50 = sphi 0, %s49
      %s64 = sphi 0, %s50
      %s68 = sphi 0, %s68
      %s70 = sphi 0, %s68
      %s71 = sphi 0, %s70
      %s85 = sphi 0, %s71
      %s89 = sphi 0, %s89
      %s91 = sphi 0, %s89
      %s92 = sphi 0, %s91
      %s106 = sphi 0, %s92
      %s112 = sphi 0, %s114
      %s115 = sphi 0, %s112
      %s116 = sphi 0, %s115
      %s132 = sphi 0, %s116
    $region4: #{tpu_custom_call.1} parent=1 // loop_header_branch
      %16 = sbr.rel (%p14) target = $region8
    $region5: #{tpu_custom_call.1} parent=1 // loop_body
      %s18 = ssub.s32 %s13, 1
      %s19 = ssub.s32 %s13, 2
      %s20 = sadd.s32 %s13, 1
      %s21 = ssub.s32 %s13, %s20
      %p22 = scmp.eq.s32.totalorder %s21, 0
      %s24 = sadd.s32 %s23, 1
      %s25 = scalar_select %p22, %s23, %s24
      %p28 = pneg %p22
      %p29 = scmp.eq.s32.totalorder %s13, 1
      %p30 = por %p28, %p29
      %p31 = scmp.ne.s32.totalorder %s23, %s26
      %p32 = scmp.eq.s32.totalorder %s13, 0
      %p33 = por %p31, %p32
      %p34 = scmp.ne.s32.totalorder %s23, %s26
      %p35 = scmp.eq.s32.totalorder %s18, 1
      %p36 = por %p34, %p35
      %p37 = scmp.ne.s32.totalorder %s26, %s27
      %p38 = scmp.eq.s32.totalorder %s18, 0
      %p39 = por %p37, %p38
      %p40 = scmp.ne.s32.totalorder %s26, %s27
      %p41 = scmp.eq.s32.totalorder %s19, 1
      %p42 = por %p40, %p41
      %p44 = scmp.ne.s32.totalorder %s27, %s43
      %p45 = scmp.eq.s32.totalorder %s19, 0
      %p46 = por %p44, %p45
      %s48 = sadd.s32 %s47, 1
      %p51 = scmp.eq.s32.totalorder %s13, 1
      %p52 = scmp.ne.s32.totalorder %s47, %s49
      %p53 = scmp.eq.s32.totalorder %s13, 0
      %p54 = por %p52, %p53
      %p55 = scmp.ne.s32.totalorder %s47, %s49
      %p56 = scmp.eq.s32.totalorder %s18, 1
      %p57 = por %p55, %p56
      %p58 = scmp.ne.s32.totalorder %s49, %s50
      %p59 = scmp.eq.s32.totalorder %s18, 0
      %p60 = por %p58, %p59
      %p61 = scmp.ne.s32.totalorder %s49, %s50
      %p62 = scmp.eq.s32.totalorder %s19, 1
      %p63 = por %p61, %p62
      %p65 = scmp.ne.s32.totalorder %s50, %s64
      %p66 = scmp.eq.s32.totalorder %s19, 0
      %p67 = por %p65, %p66
      %s69 = sadd.s32 %s68, 1
      %p72 = scmp.eq.s32.totalorder %s13, 1
      %p73 = scmp.ne.s32.totalorder %s68, %s70
      %p74 = scmp.eq.s32.totalorder %s13, 0
      %p75 = por %p73, %p74
      %p76 = scmp.ne.s32.totalorder %s68, %s70
      %p77 = scmp.eq.s32.totalorder %s18, 1
      %p78 = por %p76, %p77
      %p79 = scmp.ne.s32.totalorder %s70, %s71
      %p80 = scmp.eq.s32.totalorder %s18, 0
      %p81 = por %p79, %p80
      %p82 = scmp.ne.s32.totalorder %s70, %s71
      %p83 = scmp.eq.s32.totalorder %s19, 1
      %p84 = por %p82, %p83
      %p86 = scmp.ne.s32.totalorder %s71, %s85
      %p87 = scmp.eq.s32.totalorder %s19, 0
      %p88 = por %p86, %p87
      %s90 = sadd.s32 %s89, 1
      %p93 = scmp.eq.s32.totalorder %s13, 1
      %p94 = scmp.ne.s32.totalorder %s89, %s91
      %p95 = scmp.eq.s32.totalorder %s13, 0
      %p96 = por %p94, %p95
      %p97 = scmp.ne.s32.totalorder %s89, %s91
      %p98 = scmp.eq.s32.totalorder %s18, 1
      %p99 = por %p97, %p98
      %p100 = scmp.ne.s32.totalorder %s91, %s92
      %p101 = scmp.eq.s32.totalorder %s18, 0
      %p102 = por %p100, %p101
      %p103 = scmp.ne.s32.totalorder %s91, %s92
      %p104 = scmp.eq.s32.totalorder %s19, 1
      %p105 = por %p103, %p104
      %p107 = scmp.ne.s32.totalorder %s92, %s106
      %p108 = scmp.eq.s32.totalorder %s19, 0
      %p109 = por %p107, %p108
      %s110 = ssub.s32 %s13, %s20
      %p111 = scmp.eq.s32.totalorder %s110, 0
      %s113 = sadd.s32 %s112, 1
      %s114 = scalar_select %p111, %s112, %s113
      %p117 = pneg %p111
      %p118 = scmp.eq.s32.totalorder %s13, 1
      %p119 = por %p117, %p118
      %p120 = scmp.ne.s32.totalorder %s112, %s115
      %p121 = scmp.eq.s32.totalorder %s13, 0
      %p122 = por %p120, %p121
      %p123 = scmp.ne.s32.totalorder %s112, %s115
      %p124 = scmp.eq.s32.totalorder %s18, 1
      %p125 = por %p123, %p124
      %p126 = scmp.ne.s32.totalorder %s115, %s116
      %p127 = scmp.eq.s32.totalorder %s18, 0
      %p128 = por %p126, %p127
      %p129 = scmp.ne.s32.totalorder %s115, %s116
      %p130 = scmp.eq.s32.totalorder %s19, 1
      %p131 = por %p129, %p130
      %p133 = scmp.ne.s32.totalorder %s116, %s132
      %p134 = scmp.eq.s32.totalorder %s19, 0
      %p135 = por %p133, %p134
      %p136 = scmp.le.s32.totalorder 1, %s13
      %p137 = scmp.lt.s32.totalorder %s13, 3
      %p138 = pnand %p136, %p137
      %p139 = pneg %p138
      // Predicated region
      $region9: #{tpu_custom_call.1} parent=5 // pred_check
        _
      $region10: #{tpu_custom_call.1} parent=5 // pred_check_branch
        %141 = sbr.rel (%p138) target = $region12
      $region11: #{tpu_custom_call.1} parent=5 // pred_region
        %s142 = ssub.s32 %s13, 1
        // Predicated region
        $region13: #{tpu_custom_call.1} parent=11 // pred_check
          %p143 = pneg %p60
        $region14: #{tpu_custom_call.1} parent=11 // pred_check_branch
          %145 = sbr.rel (%p143) target = $region16
        $region15: #{tpu_custom_call.1} parent=11 // pred_region
          _
        $region16: #{tpu_custom_call.1} parent=11 // pred_fallthru
          _
        // Predicated region
        $region17: #{tpu_custom_call.1} parent=11 // pred_check
          %p146 = pneg %p81
        $region18: #{tpu_custom_call.1} parent=11 // pred_check_branch
          %148 = sbr.rel (%p146) target = $region20
        $region19: #{tpu_custom_call.1} parent=11 // pred_region
          _
        $region20: #{tpu_custom_call.1} parent=11 // pred_fallthru
          _
        // Predicated region
        $region21: #{tpu_custom_call.1} parent=11 // pred_check
          %p149 = pneg %p102
        $region22: #{tpu_custom_call.1} parent=11 // pred_check_branch
          %151 = sbr.rel (%p149) target = $region24
        $region23: #{tpu_custom_call.1} parent=11 // pred_region
          _
        $region24: #{tpu_custom_call.1} parent=11 // pred_fallthru
          _
      $region12: #{tpu_custom_call.1} parent=5 // pred_fallthru
        _
      %p152 = scmp.lt.s32.totalorder %s13, 2
      // Predicated region
      $region25: #{tpu_custom_call.1} parent=5 // pred_check
        %p153 = pneg %p152
      $region26: #{tpu_custom_call.1} parent=5 // pred_check_branch
        %155 = sbr.rel (%p153) target = $region28
      $region27: #{tpu_custom_call.1} parent=5 // pred_region
        // Predicated region
        $region29: #{tpu_custom_call.1} parent=27 // pred_check
          %p156 = pneg %p33
        $region30: #{tpu_custom_call.1} parent=27 // pred_check_branch
          %158 = sbr.rel (%p156) target = $region32
        $region31: #{tpu_custom_call.1} parent=27 // pred_region
          %p159 = scmp.lt.s32.totalorder %s13, 1
          %s160 = scalar_select %p159, %s13, 1
          %s161 = smul.addr %s160, 16
          %s162 = smul.addr %s161, 4
          %s163 = scalar_lea.vmem %s0, %s162
        $region32: #{tpu_custom_call.1} parent=27 // pred_fallthru
          _
      $region28: #{tpu_custom_call.1} parent=5 // pred_fallthru
        _
      %p164 = scmp.le.s32.totalorder 1, %s13
      %p165 = scmp.lt.s32.totalorder %s13, 3
      %p166 = pnand %p164, %p165
      %p167 = pneg %p166
      // Predicated region
      $region33: #{tpu_custom_call.1} parent=5 // pred_check
        _
      $region34: #{tpu_custom_call.1} parent=5 // pred_check_branch
        %169 = sbr.rel (%p166) target = $region36
      $region35: #{tpu_custom_call.1} parent=5 // pred_region
        %s170 = ssub.s32 %s13, 1
        %p171 = scmp.lt.s32.totalorder %s18, 1
        %s172 = scalar_select %p171, %s18, 1
        %s173 = smul.addr %s172, 16
        %s174 = smul.addr %s173, 4
        %s175 = scalar_lea.vmem %s0, %s174
        %p176 = pneg %p39
        %p177 = pneg %p36
        %p178 = pneg %p60
        %p179 = pneg %p57
        %p180 = pneg %p81
        %p181 = pneg %p78
        %p182 = pneg %p102
        %p183 = pneg %p99
        %p184 = pneg %p128
        %p185 = pneg %p125
        %s186 = sand.u32 %s115, 1
        %s187 = scalar_lea.sflag [#allocation3], %s186
        %s188 = sand.u32 %s115, 1
        %s189 = smul.addr %s188, 128
        %s190 = scalar_lea.vmem [#allocation2], %s189
        %p191 = scmp.lt.s32.totalorder %s18, 1
        %s192 = scalar_select %p191, %s18, 1
        %s193 = smul.addr %s192, 16
        %s194 = smul.addr %s193, 4
        %s195 = scalar_lea.vmem %s0, %s194
        %v197 = vld [vmem:[%s195] sm:$0xff]
        %v198 = vld [vmem:[%s195 + $0x8] sm:$0xff]
        %v199 = vld [vmem:[%s195 + $0x10] sm:$0xff]
        %v200 = vld [vmem:[%s195 + $0x18] sm:$0xff]
        %v201 = vld [vmem:[%s195 + $0x20] sm:$0xff]
        %v202 = vld [vmem:[%s195 + $0x28] sm:$0xff]
        %v203 = vld [vmem:[%s195 + $0x30] sm:$0xff]
        %v204 = vld [vmem:[%s195 + $0x38] sm:$0xff]
        %v205 = vld [vmem:[%s1] sm:$0xf]
        %v206 = vld [vmem:[%s1 + $0x4] sm:$0xf]
        %v207 = vld [vmem:[%s1 + $0x8] sm:$0xf]
        %v208 = vld [vmem:[%s1 + $0xc] sm:$0xf]
        %v209 = vld [vmem:[%s1 + $0x10] sm:$0xf]
        %v210 = vld [vmem:[%s1 + $0x14] sm:$0xf]
        %v211 = vld [vmem:[%s1 + $0x18] sm:$0xf]
        %v212 = vld [vmem:[%s1 + $0x1c] sm:$0xf]
        %v213 = vld [vmem:[%s1 + $0x20] sm:$0xf]
        %v214 = vld [vmem:[%s1 + $0x24] sm:$0xf]
        %v215 = vld [vmem:[%s1 + $0x28] sm:$0xf]
        %v216 = vld [vmem:[%s1 + $0x2c] sm:$0xf]
        %v217 = vld [vmem:[%s1 + $0x30] sm:$0xf]
        %v218 = vld [vmem:[%s1 + $0x34] sm:$0xf]
        %v219 = vld [vmem:[%s1 + $0x38] sm:$0xf]
        %v220 = vld [vmem:[%s1 + $0x3c] sm:$0xf]
        %v221 = vld [vmem:[%s1 + $0x40] sm:$0xf]
        %v222 = vld [vmem:[%s1 + $0x44] sm:$0xf]
        %v223 = vld [vmem:[%s1 + $0x48] sm:$0xf]
        %v224 = vld [vmem:[%s1 + $0x4c] sm:$0xf]
        %v225 = vld [vmem:[%s1 + $0x50] sm:$0xf]
        %v226 = vld [vmem:[%s1 + $0x54] sm:$0xf]
        %v227 = vld [vmem:[%s1 + $0x58] sm:$0xf]
        %v228 = vld [vmem:[%s1 + $0x5c] sm:$0xf]
        %v229 = vld [vmem:[%s1 + $0x60] sm:$0xf]
        %v230 = vld [vmem:[%s1 + $0x64] sm:$0xf]
        %v231 = vld [vmem:[%s1 + $0x68] sm:$0xf]
        %v232 = vld [vmem:[%s1 + $0x6c] sm:$0xf]
        %v233 = vld [vmem:[%s1 + $0x70] sm:$0xf]
        %v234 = vld [vmem:[%s1 + $0x74] sm:$0xf]
        %v235 = vld [vmem:[%s1 + $0x78] sm:$0xf]
        %v236 = vld [vmem:[%s1 + $0x7c] sm:$0xf]
        %v245 = vunpack.c.l.b16 %v197
        %v246 = vunpack.c.h.b16 %v197
        %v247 = vunpack.c.l.b16 %v198
        %v248 = vunpack.c.h.b16 %v198
        %v249 = vunpack.c.l.b16 %v199
        %v250 = vunpack.c.h.b16 %v199
        %v251 = vunpack.c.l.b16 %v200
        %v252 = vunpack.c.h.b16 %v200
        %v253 = vunpack.c.l.b16 %v201
        %v254 = vunpack.c.h.b16 %v201
        %v255 = vunpack.c.l.b16 %v202
        %v256 = vunpack.c.h.b16 %v202
        %v257 = vunpack.c.l.b16 %v203
        %v258 = vunpack.c.h.b16 %v203
        %v259 = vunpack.c.l.b16 %v204
        %v260 = vunpack.c.h.b16 %v204
        %v261 = vpack.c.b16 %v247, %v245
        %v262 = vpack.c.b16 %v248, %v246
        %v263 = vpack.c.b16 %v251, %v249
        %v264 = vpack.c.b16 %v252, %v250
        %v265 = vpack.c.b16 %v255, %v253
        %v266 = vpack.c.b16 %v256, %v254
        %v267 = vpack.c.b16 %v259, %v257
        %v268 = vpack.c.b16 %v260, %v258
        %v309 = vunpack.c.l.b16 %v205
        %v310 = vunpack.c.l.b16 %v206
        %v311 = vunpack.c.l.b16 %v207
        %v312 = vunpack.c.l.b16 %v208
        %v313 = vunpack.c.l.b16 %v209
        %v314 = vunpack.c.l.b16 %v210
        %v315 = vunpack.c.l.b16 %v211
        %v316 = vunpack.c.l.b16 %v212
        %v317 = vunpack.c.l.b16 %v213
        %v318 = vunpack.c.l.b16 %v214
        %v319 = vunpack.c.l.b16 %v215
        %v320 = vunpack.c.l.b16 %v216
        %v321 = vunpack.c.l.b16 %v217
        %v322 = vunpack.c.l.b16 %v218
        %v323 = vunpack.c.l.b16 %v219
        %v324 = vunpack.c.l.b16 %v220
        %v325 = vunpack.c.l.b16 %v221
        %v326 = vunpack.c.l.b16 %v222
        %v327 = vunpack.c.l.b16 %v223
        %v328 = vunpack.c.l.b16 %v224
        %v329 = vunpack.c.l.b16 %v225
        %v330 = vunpack.c.l.b16 %v226
        %v331 = vunpack.c.l.b16 %v227
        %v332 = vunpack.c.l.b16 %v228
        %v333 = vunpack.c.l.b16 %v229
        %v334 = vunpack.c.l.b16 %v230
        %v335 = vunpack.c.l.b16 %v231
        %v336 = vunpack.c.l.b16 %v232
        %v337 = vunpack.c.l.b16 %v233
        %v338 = vunpack.c.l.b16 %v234
        %v339 = vunpack.c.l.b16 %v235
        %v340 = vunpack.c.l.b16 %v236
        %v341 = vpack.c.b16 %v310, %v309
        %v342 = vpack.c.b16 %v312, %v311
        %v343 = vpack.c.b16 %v314, %v313
        %v344 = vpack.c.b16 %v316, %v315
        %v345 = vpack.c.b16 %v318, %v317
        %v346 = vpack.c.b16 %v320, %v319
        %v347 = vpack.c.b16 %v322, %v321
        %v348 = vpack.c.b16 %v324, %v323
        %v349 = vpack.c.b16 %v326, %v325
        %v350 = vpack.c.b16 %v328, %v327
        %v351 = vpack.c.b16 %v330, %v329
        %v352 = vpack.c.b16 %v332, %v331
        %v353 = vpack.c.b16 %v334, %v333
        %v354 = vpack.c.b16 %v336, %v335
        %v355 = vpack.c.b16 %v338, %v337
        %v356 = vpack.c.b16 %v340, %v339
        %373 = vmatprep.subr.bf16.mxu0 0
        %374 = vmatpush1.bf16.msra.mxu0 %v341
        %375 = vmatprep.subr.bf16.mxu0 0
        %376 = vmatpush1.bf16.msra.mxu0 %v342
        %377 = vmatprep.subr.bf16.mxu0 0
        %378 = vmatpush1.bf16.msra.mxu0 %v343
        %379 = vmatprep.subr.bf16.mxu0 0
        %380 = vmatpush1.bf16.msra.mxu0 %v344
        %381 = vmatprep.subr.bf16.mxu0 0
        %382 = vmatpush1.bf16.msra.mxu0 %v345
        %383 = vmatprep.subr.bf16.mxu0 0
        %384 = vmatpush1.bf16.msra.mxu0 %v346
        %385 = vmatprep.subr.bf16.mxu0 0
        %386 = vmatpush1.bf16.msra.mxu0 %v347
        %387 = vmatprep.subr.bf16.mxu0 0
        %388 = vmatpush1.bf16.msra.mxu0 %v348
        %389 = vmatprep.subr.bf16.mxu0 0
        %390 = vmatpush1.bf16.msra.mxu0 %v349
        %391 = vmatprep.subr.bf16.mxu0 0
        %392 = vmatpush1.bf16.msra.mxu0 %v350
        %393 = vmatprep.subr.bf16.mxu0 0
        %394 = vmatpush1.bf16.msra.mxu0 %v351
        %395 = vmatprep.subr.bf16.mxu0 0
        %396 = vmatpush1.bf16.msra.mxu0 %v352
        %397 = vmatprep.subr.bf16.mxu0 0
        %398 = vmatpush1.bf16.msra.mxu0 %v353
        %399 = vmatprep.subr.bf16.mxu0 0
        %400 = vmatpush1.bf16.msra.mxu0 %v354
        %401 = vmatprep.subr.bf16.mxu0 0
        %402 = vmatpush1.bf16.msra.mxu0 %v355
        %403 = vmatprep.subr.bf16.mxu0 0
        %404 = vmatpush1.bf16.msra.mxu0 %v356
        %405 = vmatprep.mubr.bf16.mxu0 %v262
        %406 = vmatmul.mubr.bf16.gmra.mrb[0].mxu0 %v261
        %v407 = vpop.f32.mrb[0].mxu0
        %v408 = vadd.f32 0.0, %v407
        %v409 = vpop.f32.mrb[0].mxu0
        %v410 = vpop.f32.mrb[0].mxu0
        %v411 = vadd.f32 0.0, %v410
        %v412 = vpop.f32.mrb[0].mxu0
        %413 = vmatprep.mubr.bf16.mxu0 %v264
        %414 = vmatmul.mubr.bf16.gmra.mrb[0].mxu0 %v263
        %v415 = vpop.f32.mrb[0].mxu0
        %v416 = vadd.f32 0.0, %v415
        %v417 = vpop.f32.mrb[0].mxu0
        %v418 = vpop.f32.mrb[0].mxu0
        %v419 = vadd.f32 0.0, %v418
        %v420 = vpop.f32.mrb[0].mxu0
        %421 = vmatprep.mubr.bf16.mxu0 %v266
        %422 = vmatmul.mubr.bf16.gmra.mrb[0].mxu0 %v265
        %v423 = vpop.f32.mrb[0].mxu0
        %v424 = vadd.f32 0.0, %v423
        %v425 = vpop.f32.mrb[0].mxu0
        %v426 = vpop.f32.mrb[0].mxu0
        %v427 = vadd.f32 0.0, %v426
        %v428 = vpop.f32.mrb[0].mxu0
        %429 = vmatprep.mubr.bf16.mxu0 %v268
        %430 = vmatmul.mubr.bf16.gmra.mrb[0].mxu0 %v267
        %v431 = vpop.f32.mrb[0].mxu0
        %v432 = vadd.f32 0.0, %v431
        %v433 = vpop.f32.mrb[0].mxu0
        %v434 = vpop.f32.mrb[0].mxu0
        %v435 = vadd.f32 0.0, %v434
        %v436 = vpop.f32.mrb[0].mxu0
        %437 = vdwg.mxu0
        %v438 = vmax.f32 %v408, 0.0
        %v439 = vmax.f32 %v411, 0.0
        %v440 = vmax.f32 %v416, 0.0
        %v441 = vmax.f32 %v419, 0.0
        %v442 = vmax.f32 %v424, 0.0
        %v443 = vmax.f32 %v427, 0.0
        %v444 = vmax.f32 %v432, 0.0
        %v445 = vmax.f32 %v435, 0.0
        %v446 = vpack.c.bf16 %v439, %v438
        %v447 = vpack.c.bf16 %v441, %v440
        %v448 = vpack.c.bf16 %v443, %v442
        %v449 = vpack.c.bf16 %v445, %v444
        %v454 = vunpack.c.l.b16 %v446
        %v455 = vunpack.c.h.b16 %v446
        %v456 = vunpack.c.l.b16 %v447
        %v457 = vunpack.c.h.b16 %v447
        %v458 = vunpack.c.l.b16 %v448
        %v459 = vunpack.c.h.b16 %v448
        %v460 = vunpack.c.l.b16 %v449
        %v461 = vunpack.c.h.b16 %v449
        %v462 = vpack.c.b16 %v454, %v454
        %v463 = vpack.c.b16 %v455, %v455
        %v464 = vpack.c.b16 %v456, %v456
        %v465 = vpack.c.b16 %v457, %v457
        %v466 = vpack.c.b16 %v458, %v458
        %v467 = vpack.c.b16 %v459, %v459
        %v468 = vpack.c.b16 %v460, %v460
        %v469 = vpack.c.b16 %v461, %v461
        %v471 = vshrl.u32 %v462, 16
        %v473 = vrot.slane %v471, 7
        %v474 = vshll.u32 %v462, 16
        %v476 = vor.u32 %v473, %v474
        %v478 = vshrl.u32 %v463, 16
        %v480 = vrot.slane %v478, 7
        %v481 = vshll.u32 %v463, 16
        %v483 = vor.u32 %v480, %v481
        %v485 = vshrl.u32 %v464, 16
        %v487 = vrot.slane %v485, 7
        %v488 = vshll.u32 %v464, 16
        %v490 = vor.u32 %v487, %v488
        %v492 = vshrl.u32 %v465, 16
        %v494 = vrot.slane %v492, 7
        %v495 = vshll.u32 %v465, 16
        %v497 = vor.u32 %v494, %v495
        %v499 = vshrl.u32 %v466, 16
        %v501 = vrot.slane %v499, 7
        %v502 = vshll.u32 %v466, 16
        %v504 = vor.u32 %v501, %v502
        %v506 = vshrl.u32 %v467, 16
        %v508 = vrot.slane %v506, 7
        %v509 = vshll.u32 %v467, 16
        %v511 = vor.u32 %v508, %v509
        %v513 = vshrl.u32 %v468, 16
        %v515 = vrot.slane %v513, 7
        %v516 = vshll.u32 %v468, 16
        %v518 = vor.u32 %v515, %v516
        %v520 = vshrl.u32 %v469, 16
        %v522 = vrot.slane %v520, 7
        %v523 = vshll.u32 %v469, 16
        %v525 = vor.u32 %v522, %v523
        %vm534 = vcmask 1040384
        %vm535 = vsmask.f32 256
        %vm536 = vmand %vm534, %vm535
        %v537 = vsel %vm536, 0, %v476
        %v538 = vsel %vm536, 0, %v483
        %v539 = vsel %vm536, 0, %v490
        %v540 = vsel %vm536, 0, %v497
        %v541 = vsel %vm536, 0, %v504
        %v542 = vsel %vm536, 0, %v511
        %v543 = vsel %vm536, 0, %v518
        %v544 = vsel %vm536, 0, %v525
        %v545 = vrot.slane %v474, 1
        %v546 = vor.u32 %v471, %v545
        %v547 = vrot.slane %v481, 1
        %v548 = vor.u32 %v478, %v547
        %v549 = vrot.slane %v488, 1
        %v550 = vor.u32 %v485, %v549
        %v551 = vrot.slane %v495, 1
        %v552 = vor.u32 %v492, %v551
        %v553 = vrot.slane %v502, 1
        %v554 = vor.u32 %v499, %v553
        %v555 = vrot.slane %v509, 1
        %v556 = vor.u32 %v506, %v555
        %v557 = vrot.slane %v516, 1
        %v558 = vor.u32 %v513, %v557
        %v559 = vrot.slane %v523, 1
        %v560 = vor.u32 %v520, %v559
        %vm569 = vcmask 1043456
        %vm570 = vsmask.f32 3328
        %vm571 = vmand %vm569, %vm570
        %v572 = vsel %vm571, %v546, 0
        %v573 = vsel %vm571, %v548, 0
        %v574 = vsel %vm571, %v550, 0
        %v575 = vsel %vm571, %v552, 0
        %v576 = vsel %vm571, %v554, 0
        %v577 = vsel %vm571, %v556, 0
        %v578 = vsel %vm571, %v558, 0
        %v579 = vsel %vm571, %v560, 0
        %580 = vrot.lane.b32.xlu0 %v462, 64
        %v581 = vpop.permute.xlu0 %580
        %582 = vrot.lane.b32.xlu0 %v463, 64
        %v583 = vpop.permute.xlu0 %582
        %584 = vrot.lane.b32.xlu0 %v464, 64
        %v585 = vpop.permute.xlu0 %584
        %586 = vrot.lane.b32.xlu0 %v465, 64
        %v587 = vpop.permute.xlu0 %586
        %588 = vrot.lane.b32.xlu0 %v466, 64
        %v589 = vpop.permute.xlu0 %588
        %590 = vrot.lane.b32.xlu0 %v467, 64
        %v591 = vpop.permute.xlu0 %590
        %592 = vrot.lane.b32.xlu0 %v468, 64
        %v593 = vpop.permute.xlu0 %592
        %594 = vrot.lane.b32.xlu0 %v469, 64
        %v595 = vpop.permute.xlu0 %594
        %vm596 = vcmask 523264
        %v599 = vsel %vm596, %v537, %v581
        %v602 = vsel %vm596, %v538, %v583
        %v605 = vsel %vm596, %v539, %v585
        %v608 = vsel %vm596, %v540, %v587
        %v611 = vsel %vm596, %v541, %v589
        %v614 = vsel %vm596, %v542, %v591
        %v617 = vsel %vm596, %v543, %v593
        %v620 = vsel %vm596, %v544, %v595
        %v636 = vunpack.c.l.b16 0
        %v637 = vunpack.c.l.b16 %v599
        %v638 = vunpack.c.l.b16 %v572
        %v639 = vunpack.c.l.b16 %v602
        %v640 = vunpack.c.l.b16 %v573
        %v641 = vunpack.c.l.b16 %v605
        %v642 = vunpack.c.l.b16 %v574
        %v643 = vunpack.c.l.b16 %v608
        %v644 = vunpack.c.l.b16 %v575
        %v645 = vunpack.c.l.b16 %v611
        %v646 = vunpack.c.l.b16 %v576
        %v647 = vunpack.c.l.b16 %v614
        %v648 = vunpack.c.l.b16 %v577
        %v649 = vunpack.c.l.b16 %v617
        %v650 = vunpack.c.l.b16 %v578
        %v651 = vld [vmem:[%s2] sm:$0xf]
        %v652 = vld [vmem:[%s2 + $0x4] sm:$0xf]
        %v653 = vld [vmem:[%s2 + $0x8] sm:$0xf]
        %v654 = vld [vmem:[%s2 + $0xc] sm:$0xf]
        %v655 = vld [vmem:[%s2 + $0x10] sm:$0xf]
        %v656 = vld [vmem:[%s2 + $0x14] sm:$0xf]
        %v657 = vld [vmem:[%s2 + $0x18] sm:$0xf]
        %v658 = vld [vmem:[%s2 + $0x1c] sm:$0xf]
        %v659 = vld [vmem:[%s2 + $0x20] sm:$0xf]
        %v660 = vld [vmem:[%s2 + $0x24] sm:$0xf]
        %v661 = vld [vmem:[%s2 + $0x28] sm:$0xf]
        %v662 = vld [vmem:[%s2 + $0x2c] sm:$0xf]
        %v663 = vld [vmem:[%s2 + $0x30] sm:$0xf]
        %v664 = vld [vmem:[%s2 + $0x34] sm:$0xf]
        %v665 = vld [vmem:[%s2 + $0x38] sm:$0xf]
        %v666 = vld [vmem:[%s2 + $0x3c] sm:$0xf]
        %v667 = vld [vmem:[%s2 + $0x40] sm:$0xf]
        %v668 = vld [vmem:[%s2 + $0x44] sm:$0xf]
        %v669 = vld [vmem:[%s2 + $0x48] sm:$0xf]
        %v670 = vld [vmem:[%s2 + $0x4c] sm:$0xf]
        %v671 = vld [vmem:[%s2 + $0x50] sm:$0xf]
        %v672 = vld [vmem:[%s2 + $0x54] sm:$0xf]
        %v673 = vld [vmem:[%s2 + $0x58] sm:$0xf]
        %v674 = vld [vmem:[%s2 + $0x5c] sm:$0xf]
        %v677 = vunpack.c.l.b16 %v620
        %v678 = vunpack.c.l.b16 %v579
        %s679 = scalar_lea.vmem %s2, 96
        %v680 = vld [vmem:[%s679] sm:$0xf]
        %v681 = vld [vmem:[%s679 + $0x4] sm:$0xf]
        %v682 = vld [vmem:[%s679 + $0x8] sm:$0xf]
        %v683 = vld [vmem:[%s679 + $0xc] sm:$0xf]
        %v684 = vld [vmem:[%s679 + $0x10] sm:$0xf]
        %v685 = vld [vmem:[%s679 + $0x14] sm:$0xf]
        %v686 = vld [vmem:[%s679 + $0x18] sm:$0xf]
        %v687 = vld [vmem:[%s679 + $0x1c] sm:$0xf]
        %v688 = vld [vmem:[%s679 + $0x20] sm:$0xf]
        %v689 = vld [vmem:[%s679 + $0x24] sm:$0xf]
        %v690 = vld [vmem:[%s679 + $0x28] sm:$0xf]
        %v691 = vld [vmem:[%s679 + $0x2c] sm:$0xf]
        %v692 = vld [vmem:[%s679 + $0x30] sm:$0xf]
        %v693 = vld [vmem:[%s679 + $0x34] sm:$0xf]
        %v694 = vld [vmem:[%s679 + $0x38] sm:$0xf]
        %v695 = vld [vmem:[%s679 + $0x3c] sm:$0xf]
        %v696 = vld [vmem:[%s679 + $0x40] sm:$0xf]
        %v697 = vld [vmem:[%s679 + $0x44] sm:$0xf]
        %v698 = vld [vmem:[%s679 + $0x48] sm:$0xf]
        %v699 = vld [vmem:[%s679 + $0x4c] sm:$0xf]
        %v700 = vld [vmem:[%s679 + $0x50] sm:$0xf]
        %v701 = vld [vmem:[%s679 + $0x54] sm:$0xf]
        %v702 = vld [vmem:[%s679 + $0x58] sm:$0xf]
        %v703 = vld [vmem:[%s679 + $0x5c] sm:$0xf]
        %v704 = vpack.c.b16 %v639, %v637
        %v705 = vpack.c.b16 %v640, %v638
        %v706 = vpack.c.b16 %v643, %v641
        %v707 = vpack.c.b16 %v644, %v642
        %v708 = vpack.c.b16 %v647, %v645
        %v709 = vpack.c.b16 %v648, %v646
        %v710 = vpack.c.b16 %v677, %v649
        %v711 = vpack.c.b16 %v678, %v650
        %v740 = vunpack.c.l.b16 %v680
        %v741 = vunpack.c.l.b16 %v681
        %v742 = vunpack.c.l.b16 %v682
        %v743 = vunpack.c.l.b16 %v683
        %v744 = vunpack.c.l.b16 %v684
        %v745 = vunpack.c.l.b16 %v685
        %v746 = vunpack.c.l.b16 %v686
        %v747 = vunpack.c.l.b16 %v687
        %v748 = vunpack.c.l.b16 %v688
        %v749 = vunpack.c.l.b16 %v689
        %v750 = vunpack.c.l.b16 %v690
        %v751 = vunpack.c.l.b16 %v691
        %v752 = vunpack.c.l.b16 %v692
        %v753 = vunpack.c.l.b16 %v693
        %v754 = vunpack.c.l.b16 %v694
        %v755 = vunpack.c.l.b16 %v695
        %v756 = vunpack.c.l.b16 %v696
        %v757 = vunpack.c.l.b16 %v697
        %v758 = vunpack.c.l.b16 %v698
        %v759 = vunpack.c.l.b16 %v699
        %v760 = vunpack.c.l.b16 %v700
        %v761 = vunpack.c.l.b16 %v701
        %v762 = vunpack.c.l.b16 %v702
        %v763 = vunpack.c.l.b16 %v703
        %v764 = vpack.c.b16 %v741, %v740
        %v765 = vpack.c.b16 %v743, %v742
        %v766 = vpack.c.b16 %v745, %v744
        %v767 = vpack.c.b16 %v747, %v746
        %v768 = vpack.c.b16 %v749, %v748
        %v769 = vpack.c.b16 %v751, %v750
        %v770 = vpack.c.b16 %v753, %v752
        %v771 = vpack.c.b16 %v755, %v754
        %v772 = vpack.c.b16 %v757, %v756
        %v773 = vpack.c.b16 %v759, %v758
        %v774 = vpack.c.b16 %v761, %v760
        %v775 = vpack.c.b16 %v763, %v762
        %v789 = vsel %vm596, %v705, 0
        %v792 = vsel %vm596, %v707, 0
        %v795 = vsel %vm596, %v709, 0
        %v798 = vsel %vm596, %v711, 0
        %800 = vmatprep.subr.bf16.mxu0 0
        %801 = vmatpush1.bf16.msra.mxu0 %v764
        %802 = vmatprep.subr.bf16.mxu0 0
        %803 = vmatpush1.bf16.msra.mxu0 %v765
        %804 = vmatprep.subr.bf16.mxu0 0
        %805 = vmatpush1.bf16.msra.mxu0 %v766
        %806 = vmatprep.subr.bf16.mxu0 0
        %807 = vmatpush1.bf16.msra.mxu0 %v767
        %808 = vmatprep.subr.bf16.mxu0 0
        %809 = vmatpush1.bf16.msra.mxu0 %v768
        %810 = vmatprep.subr.bf16.mxu0 0
        %811 = vmatpush1.bf16.msra.mxu0 %v769
        %812 = vmatprep.subr.bf16.mxu0 0
        %813 = vmatpush1.bf16.msra.mxu0 %v770
        %814 = vmatprep.subr.bf16.mxu0 0
        %815 = vmatpush1.bf16.msra.mxu0 %v771
        %816 = vmatprep.subr.bf16.mxu0 0
        %817 = vmatpush1.bf16.msra.mxu0 %v772
        %818 = vmatprep.subr.bf16.mxu0 0
        %819 = vmatpush1.bf16.msra.mxu0 %v773
        %820 = vmatprep.subr.bf16.mxu0 0
        %821 = vmatpush1.bf16.msra.mxu0 %v774
        %822 = vmatprep.subr.bf16.mxu0 0
        %823 = vmatpush1.bf16.msra.mxu0 %v775
        %824 = vmatprep.subr.bf16.mxu0 0
        %825 = vmatpush1.bf16.msra.mxu0 0
        %826 = vmatprep.subr.bf16.mxu0 0
        %827 = vmatpush1.bf16.msra.mxu0 0
        %828 = vmatprep.subr.bf16.mxu0 0
        %829 = vmatpush1.bf16.msra.mxu0 0
        %830 = vmatprep.subr.bf16.mxu0 0
        %831 = vmatpush1.bf16.msra.mxu0 0
        %832 = vmatprep.mubr.bf16.mxu0 %v789
        %833 = vmatmul.mubr.bf16.gmra.mrb[0].mxu0 %v704
        %v834 = vpop.f32.mrb[0].mxu0
        %v835 = vadd.f32 0.0, %v834
        %v836 = vpop.f32.mrb[0].mxu0
        %v837 = vpop.f32.mrb[0].mxu0
        %v838 = vadd.f32 0.0, %v837
        %v839 = vpop.f32.mrb[0].mxu0
        %840 = vmatprep.mubr.bf16.mxu0 %v792
        %841 = vmatmul.mubr.bf16.gmra.mrb[0].mxu0 %v706
        %v842 = vpop.f32.mrb[0].mxu0
        %v843 = vadd.f32 0.0, %v842
        %v844 = vpop.f32.mrb[0].mxu0
        %v845 = vpop.f32.mrb[0].mxu0
        %v846 = vadd.f32 0.0, %v845
        %v847 = vpop.f32.mrb[0].mxu0
        %848 = vmatprep.mubr.bf16.mxu0 %v795
        %849 = vmatmul.mubr.bf16.gmra.mrb[0].mxu0 %v708
        %v850 = vpop.f32.mrb[0].mxu0
        %v851 = vadd.f32 0.0, %v850
        %v852 = vpop.f32.mrb[0].mxu0
        %v853 = vpop.f32.mrb[0].mxu0
        %v854 = vadd.f32 0.0, %v853
        %v855 = vpop.f32.mrb[0].mxu0
        %856 = vmatprep.mubr.bf16.mxu0 %v798
        %857 = vmatmul.mubr.bf16.gmra.mrb[0].mxu0 %v710
        %v858 = vpop.f32.mrb[0].mxu0
        %v859 = vadd.f32 0.0, %v858
        %v860 = vpop.f32.mrb[0].mxu0
        %v861 = vpop.f32.mrb[0].mxu0
        %v862 = vadd.f32 0.0, %v861
        %v863 = vpop.f32.mrb[0].mxu0
        %864 = vdwg.mxu0
        %v865 = vpack.c.b16 %v637, %v636
        %v866 = vpack.c.b16 %v638, %v636
        %v867 = vpack.c.b16 %v641, %v639
        %v868 = vpack.c.b16 %v642, %v640
        %v869 = vpack.c.b16 %v645, %v643
        %v870 = vpack.c.b16 %v646, %v644
        %v871 = vpack.c.b16 %v649, %v647
        %v872 = vpack.c.b16 %v650, %v648
        %v901 = vunpack.c.l.b16 %v651
        %v902 = vunpack.c.l.b16 %v652
        %v903 = vunpack.c.l.b16 %v653
        %v904 = vunpack.c.l.b16 %v654
        %v905 = vunpack.c.l.b16 %v655
        %v906 = vunpack.c.l.b16 %v656
        %v907 = vunpack.c.l.b16 %v657
        %v908 = vunpack.c.l.b16 %v658
        %v909 = vunpack.c.l.b16 %v659
        %v910 = vunpack.c.l.b16 %v660
        %v911 = vunpack.c.l.b16 %v661
        %v912 = vunpack.c.l.b16 %v662
        %v913 = vunpack.c.l.b16 %v663
        %v914 = vunpack.c.l.b16 %v664
        %v915 = vunpack.c.l.b16 %v665
        %v916 = vunpack.c.l.b16 %v666
        %v917 = vunpack.c.l.b16 %v667
        %v918 = vunpack.c.l.b16 %v668
        %v919 = vunpack.c.l.b16 %v669
        %v920 = vunpack.c.l.b16 %v670
        %v921 = vunpack.c.l.b16 %v671
        %v922 = vunpack.c.l.b16 %v672
        %v923 = vunpack.c.l.b16 %v673
        %v924 = vunpack.c.l.b16 %v674
        %v925 = vpack.c.b16 %v902, %v901
        %v926 = vpack.c.b16 %v904, %v903
        %v927 = vpack.c.b16 %v906, %v905
        %v928 = vpack.c.b16 %v908, %v907
        %v929 = vpack.c.b16 %v910, %v909
        %v930 = vpack.c.b16 %v912, %v911
        %v931 = vpack.c.b16 %v914, %v913
        %v932 = vpack.c.b16 %v916, %v915
        %v933 = vpack.c.b16 %v918, %v917
        %v934 = vpack.c.b16 %v920, %v919
        %v935 = vpack.c.b16 %v922, %v921
        %v936 = vpack.c.b16 %v924, %v923
        %v950 = vsel %vm596, %v866, 0
        %v953 = vsel %vm596, %v868, 0
        %v956 = vsel %vm596, %v870, 0
        %v959 = vsel %vm596, %v872, 0
        %961 = vmatprep.subr.bf16.mxu0 0
        %962 = vmatpush1.bf16.msra.mxu0 %v925
        %963 = vmatprep.subr.bf16.mxu0 0
        %964 = vmatpush1.bf16.msra.mxu0 %v926
        %965 = vmatprep.subr.bf16.mxu0 0
        %966 = vmatpush1.bf16.msra.mxu0 %v927
        %967 = vmatprep.subr.bf16.mxu0 0
        %968 = vmatpush1.bf16.msra.mxu0 %v928
        %969 = vmatprep.subr.bf16.mxu0 0
        %970 = vmatpush1.bf16.msra.mxu0 %v929
        %971 = vmatprep.subr.bf16.mxu0 0
        %972 = vmatpush1.bf16.msra.mxu0 %v930
        %973 = vmatprep.subr.bf16.mxu0 0
        %974 = vmatpush1.bf16.msra.mxu0 %v931
        %975 = vmatprep.subr.bf16.mxu0 0
        %976 = vmatpush1.bf16.msra.mxu0 %v932
        %977 = vmatprep.subr.bf16.mxu0 0
        %978 = vmatpush1.bf16.msra.mxu0 %v933
        %979 = vmatprep.subr.bf16.mxu0 0
        %980 = vmatpush1.bf16.msra.mxu0 %v934
        %981 = vmatprep.subr.bf16.mxu0 0
        %982 = vmatpush1.bf16.msra.mxu0 %v935
        %983 = vmatprep.subr.bf16.mxu0 0
        %984 = vmatpush1.bf16.msra.mxu0 %v936
        %985 = vmatprep.subr.bf16.mxu0 0
        %986 = vmatpush1.bf16.msra.mxu0 0
        %987 = vmatprep.subr.bf16.mxu0 0
        %988 = vmatpush1.bf16.msra.mxu0 0
        %989 = vmatprep.subr.bf16.mxu0 0
        %990 = vmatpush1.bf16.msra.mxu0 0
        %991 = vmatprep.subr.bf16.mxu0 0
        %992 = vmatpush1.bf16.msra.mxu0 0
        %993 = vmatprep.mubr.bf16.mxu0 %v950
        %994 = vmatmul.mubr.bf16.gmra.mrb[0].mxu0 %v865
        %v995 = vpop.f32.mrb[0].mxu0
        %v996 = vadd.f32 %v835, %v995
        %v997 = vpop.f32.mrb[0].mxu0
        %v998 = vpop.f32.mrb[0].mxu0
        %v999 = vadd.f32 %v838, %v998
        %v1000 = vpop.f32.mrb[0].mxu0
        %1001 = vmatprep.mubr.bf16.mxu0 %v953
        %1002 = vmatmul.mubr.bf16.gmra.mrb[0].mxu0 %v867
        %v1003 = vpop.f32.mrb[0].mxu0
        %v1004 = vadd.f32 %v843, %v1003
        %v1005 = vpop.f32.mrb[0].mxu0
        %v1006 = vpop.f32.mrb[0].mxu0
        %v1007 = vadd.f32 %v846, %v1006
        %v1008 = vpop.f32.mrb[0].mxu0
        %1009 = vmatprep.mubr.bf16.mxu0 %v956
        %1010 = vmatmul.mubr.bf16.gmra.mrb[0].mxu0 %v869
        %v1011 = vpop.f32.mrb[0].mxu0
        %v1012 = vadd.f32 %v851, %v1011
        %v1013 = vpop.f32.mrb[0].mxu0
        %v1014 = vpop.f32.mrb[0].mxu0
        %v1015 = vadd.f32 %v854, %v1014
        %v1016 = vpop.f32.mrb[0].mxu0
        %1017 = vmatprep.mubr.bf16.mxu0 %v959
        %1018 = vmatmul.mubr.bf16.gmra.mrb[0].mxu0 %v871
        %v1019 = vpop.f32.mrb[0].mxu0
        %v1020 = vadd.f32 %v859, %v1019
        %v1021 = vpop.f32.mrb[0].mxu0
        %v1022 = vpop.f32.mrb[0].mxu0
        %v1023 = vadd.f32 %v862, %v1022
        %v1024 = vpop.f32.mrb[0].mxu0
        %1025 = vdwg.mxu0
        %s1026 = scalar_lea.vmem %s2, 192
        %v1027 = vld [vmem:[%s1026] sm:$0xf]
        %v1028 = vld [vmem:[%s1026 + $0x4] sm:$0xf]
        %v1029 = vld [vmem:[%s1026 + $0x8] sm:$0xf]
        %v1030 = vld [vmem:[%s1026 + $0xc] sm:$0xf]
        %v1031 = vld [vmem:[%s1026 + $0x10] sm:$0xf]
        %v1032 = vld [vmem:[%s1026 + $0x14] sm:$0xf]
        %v1033 = vld [vmem:[%s1026 + $0x18] sm:$0xf]
        %v1034 = vld [vmem:[%s1026 + $0x1c] sm:$0xf]
        %v1035 = vld [vmem:[%s1026 + $0x20] sm:$0xf]
        %v1036 = vld [vmem:[%s1026 + $0x24] sm:$0xf]
        %v1037 = vld [vmem:[%s1026 + $0x28] sm:$0xf]
        %v1038 = vld [vmem:[%s1026 + $0x2c] sm:$0xf]
        %v1039 = vld [vmem:[%s1026 + $0x30] sm:$0xf]
        %v1040 = vld [vmem:[%s1026 + $0x34] sm:$0xf]
        %v1041 = vld [vmem:[%s1026 + $0x38] sm:$0xf]
        %v1042 = vld [vmem:[%s1026 + $0x3c] sm:$0xf]
        %v1043 = vld [vmem:[%s1026 + $0x40] sm:$0xf]
        %v1044 = vld [vmem:[%s1026 + $0x44] sm:$0xf]
        %v1045 = vld [vmem:[%s1026 + $0x48] sm:$0xf]
        %v1046 = vld [vmem:[%s1026 + $0x4c] sm:$0xf]
        %v1047 = vld [vmem:[%s1026 + $0x50] sm:$0xf]
        %v1048 = vld [vmem:[%s1026 + $0x54] sm:$0xf]
        %v1049 = vld [vmem:[%s1026 + $0x58] sm:$0xf]
        %v1050 = vld [vmem:[%s1026 + $0x5c] sm:$0xf]
        %v1051 = vpack.c.b16 %v636, %v677
        %v1052 = vpack.c.b16 %v636, %v678
        %v1078 = vunpack.c.l.b16 %v1027
        %v1079 = vunpack.c.l.b16 %v1028
        %v1080 = vunpack.c.l.b16 %v1029
        %v1081 = vunpack.c.l.b16 %v1030
        %v1082 = vunpack.c.l.b16 %v1031
        %v1083 = vunpack.c.l.b16 %v1032
        %v1084 = vunpack.c.l.b16 %v1033
        %v1085 = vunpack.c.l.b16 %v1034
        %v1086 = vunpack.c.l.b16 %v1035
        %v1087 = vunpack.c.l.b16 %v1036
        %v1088 = vunpack.c.l.b16 %v1037
        %v1089 = vunpack.c.l.b16 %v1038
        %v1090 = vunpack.c.l.b16 %v1039
        %v1091 = vunpack.c.l.b16 %v1040
        %v1092 = vunpack.c.l.b16 %v1041
        %v1093 = vunpack.c.l.b16 %v1042
        %v1094 = vunpack.c.l.b16 %v1043
        %v1095 = vunpack.c.l.b16 %v1044
        %v1096 = vunpack.c.l.b16 %v1045
        %v1097 = vunpack.c.l.b16 %v1046
        %v1098 = vunpack.c.l.b16 %v1047
        %v1099 = vunpack.c.l.b16 %v1048
        %v1100 = vunpack.c.l.b16 %v1049
        %v1101 = vunpack.c.l.b16 %v1050
        %v1102 = vpack.c.b16 %v1079, %v1078
        %v1103 = vpack.c.b16 %v1081, %v1080
        %v1104 = vpack.c.b16 %v1083, %v1082
        %v1105 = vpack.c.b16 %v1085, %v1084
        %v1106 = vpack.c.b16 %v1087, %v1086
        %v1107 = vpack.c.b16 %v1089, %v1088
        %v1108 = vpack.c.b16 %v1091, %v1090
        %v1109 = vpack.c.b16 %v1093, %v1092
        %v1110 = vpack.c.b16 %v1095, %v1094
        %v1111 = vpack.c.b16 %v1097, %v1096
        %v1112 = vpack.c.b16 %v1099, %v1098
        %v1113 = vpack.c.b16 %v1101, %v1100
        %v1127 = vsel %vm596, %v1052, 0
        %1129 = vmatprep.subr.bf16.mxu0 0
        %1130 = vmatpush1.bf16.msra.mxu0 %v1102
        %1131 = vmatprep.subr.bf16.mxu0 0
        %1132 = vmatpush1.bf16.msra.mxu0 %v1103
        %1133 = vmatprep.subr.bf16.mxu0 0
        %1134 = vmatpush1.bf16.msra.mxu0 %v1104
        %1135 = vmatprep.subr.bf16.mxu0 0
        %1136 = vmatpush1.bf16.msra.mxu0 %v1105
        %1137 = vmatprep.subr.bf16.mxu0 0
        %1138 = vmatpush1.bf16.msra.mxu0 %v1106
        %1139 = vmatprep.subr.bf16.mxu0 0
        %1140 = vmatpush1.bf16.msra.mxu0 %v1107
        %1141 = vmatprep.subr.bf16.mxu0 0
        %1142 = vmatpush1.bf16.msra.mxu0 %v1108
        %1143 = vmatprep.subr.bf16.mxu0 0
        %1144 = vmatpush1.bf16.msra.mxu0 %v1109
        %1145 = vmatprep.subr.bf16.mxu0 0
        %1146 = vmatpush1.bf16.msra.mxu0 %v1110
        %1147 = vmatprep.subr.bf16.mxu0 0
        %1148 = vmatpush1.bf16.msra.mxu0 %v1111
        %1149 = vmatprep.subr.bf16.mxu0 0
        %1150 = vmatpush1.bf16.msra.mxu0 %v1112
        %1151 = vmatprep.subr.bf16.mxu0 0
        %1152 = vmatpush1.bf16.msra.mxu0 %v1113
        %1153 = vmatprep.subr.bf16.mxu0 0
        %1154 = vmatpush1.bf16.msra.mxu0 0
        %1155 = vmatprep.subr.bf16.mxu0 0
        %1156 = vmatpush1.bf16.msra.mxu0 0
        %1157 = vmatprep.subr.bf16.mxu0 0
        %1158 = vmatpush1.bf16.msra.mxu0 0
        %1159 = vmatprep.subr.bf16.mxu0 0
        %1160 = vmatpush1.bf16.msra.mxu0 0
        %1161 = vmatprep.mubr.bf16.mxu0 %v953
        %1162 = vmatmul.mubr.bf16.gmra.mrb[0].mxu0 %v867
        %v1163 = vpop.f32.mrb[0].mxu0
        %v1164 = vadd.f32 0.0, %v1163
        %v1165 = vpop.f32.mrb[0].mxu0
        %v1166 = vpop.f32.mrb[0].mxu0
        %v1167 = vadd.f32 0.0, %v1166
        %v1168 = vpop.f32.mrb[0].mxu0
        %1169 = vmatprep.mubr.bf16.mxu0 %v956
        %1170 = vmatmul.mubr.bf16.gmra.mrb[0].mxu0 %v869
        %v1171 = vpop.f32.mrb[0].mxu0
        %v1172 = vadd.f32 0.0, %v1171
        %v1173 = vpop.f32.mrb[0].mxu0
        %v1174 = vpop.f32.mrb[0].mxu0
        %v1175 = vadd.f32 0.0, %v1174
        %v1176 = vpop.f32.mrb[0].mxu0
        %1177 = vmatprep.mubr.bf16.mxu0 %v959
        %1178 = vmatmul.mubr.bf16.gmra.mrb[0].mxu0 %v871
        %v1179 = vpop.f32.mrb[0].mxu0
        %v1180 = vadd.f32 0.0, %v1179
        %v1181 = vpop.f32.mrb[0].mxu0
        %v1182 = vpop.f32.mrb[0].mxu0
        %v1183 = vadd.f32 0.0, %v1182
        %v1184 = vpop.f32.mrb[0].mxu0
        %1185 = vmatprep.mubr.bf16.mxu0 %v1127
        %1186 = vmatmul.mubr.bf16.gmra.mrb[0].mxu0 %v1051
        %v1187 = vpop.f32.mrb[0].mxu0
        %v1188 = vadd.f32 0.0, %v1187
        %v1189 = vpop.f32.mrb[0].mxu0
        %v1190 = vpop.f32.mrb[0].mxu0
        %v1191 = vadd.f32 0.0, %v1190
        %v1192 = vpop.f32.mrb[0].mxu0
        %1193 = vdwg.mxu0
        %v1194 = vadd.f32 %v996, %v1164
        %v1195 = vadd.f32 %v999, %v1167
        %v1196 = vadd.f32 %v1004, %v1172
        %v1197 = vadd.f32 %v1007, %v1175
        %v1198 = vadd.f32 %v1012, %v1180
        %v1199 = vadd.f32 %v1015, %v1183
        %v1200 = vadd.f32 %v1020, %v1188
        %v1201 = vadd.f32 %v1023, %v1191
        %v1202 = vmax.f32 %v1194, 0.0
        %v1203 = vmax.f32 %v1195, 0.0
        %v1204 = vmax.f32 %v1196, 0.0
        %v1205 = vmax.f32 %v1197, 0.0
        %v1206 = vmax.f32 %v1198, 0.0
        %v1207 = vmax.f32 %v1199, 0.0
        %v1208 = vmax.f32 %v1200, 0.0
        %v1209 = vmax.f32 %v1201, 0.0
        %v1210 = vpack.c.bf16 %v1203, %v1202
        %v1211 = vpack.c.bf16 %v1205, %v1204
        %v1212 = vpack.c.bf16 %v1207, %v1206
        %v1213 = vpack.c.bf16 %v1209, %v1208
        %v1214 = vld [vmem:[%s3] sm:$0xff]
        %v1215 = vld [vmem:[%s3 + $0x8] sm:$0xff]
        %v1216 = vld [vmem:[%s3 + $0x10] sm:$0xff]
        %v1217 = vld [vmem:[%s3 + $0x18] sm:$0xff]
        %v1218 = vld [vmem:[%s3 + $0x20] sm:$0xff]
        %v1219 = vld [vmem:[%s3 + $0x28] sm:$0xff]
        %v1220 = vld [vmem:[%s3 + $0x30] sm:$0xff]
        %v1221 = vld [vmem:[%s3 + $0x38] sm:$0xff]
        %v1222 = vunpack.c.l.bf16 %v197
        %v1223 = vunpack.c.h.bf16 %v197
        %v1224 = vunpack.c.l.bf16 %v198
        %v1225 = vunpack.c.h.bf16 %v198
        %v1226 = vunpack.c.l.bf16 %v199
        %v1227 = vunpack.c.h.bf16 %v199
        %v1228 = vunpack.c.l.bf16 %v200
        %v1229 = vunpack.c.h.bf16 %v200
        %v1230 = vunpack.c.l.bf16 %v201
        %v1231 = vunpack.c.h.bf16 %v201
        %v1232 = vunpack.c.l.bf16 %v202
        %v1233 = vunpack.c.h.bf16 %v202
        %v1234 = vunpack.c.l.bf16 %v203
        %v1235 = vunpack.c.h.bf16 %v203
        %v1236 = vunpack.c.l.bf16 %v204
        %v1237 = vunpack.c.h.bf16 %v204
        %v1246 = vunpack.c.l.b16 %v1214
        %v1247 = vunpack.c.h.b16 %v1214
        %v1248 = vunpack.c.l.b16 %v1215
        %v1249 = vunpack.c.h.b16 %v1215
        %v1250 = vunpack.c.l.b16 %v1216
        %v1251 = vunpack.c.h.b16 %v1216
        %v1252 = vunpack.c.l.b16 %v1217
        %v1253 = vunpack.c.h.b16 %v1217
        %v1254 = vunpack.c.l.b16 %v1218
        %v1255 = vunpack.c.h.b16 %v1218
        %v1256 = vunpack.c.l.b16 %v1219
        %v1257 = vunpack.c.h.b16 %v1219
        %v1258 = vunpack.c.l.b16 %v1220
        %v1259 = vunpack.c.h.b16 %v1220
        %v1260 = vunpack.c.l.b16 %v1221
        %v1261 = vunpack.c.h.b16 %v1221
        %v1262 = vpack.c.b16 %v1248, %v1246
        %v1263 = vpack.c.b16 %v1249, %v1247
        %v1264 = vpack.c.b16 %v1252, %v1250
        %v1265 = vpack.c.b16 %v1253, %v1251
        %v1266 = vpack.c.b16 %v1256, %v1254
        %v1267 = vpack.c.b16 %v1257, %v1255
        %v1268 = vpack.c.b16 %v1260, %v1258
        %v1269 = vpack.c.b16 %v1261, %v1259
        %v1279 = vsel %vm596, %v1210, 0
        %v1282 = vsel %vm596, %v1211, 0
        %v1285 = vsel %vm596, %v1212, 0
        %v1288 = vsel %vm596, %v1213, 0
        %1290 = vmatprep.subr.bf16.mxu0 %v1263
        %1291 = vmatpush1.bf16.msra.mxu0 %v1262
        %1292 = vmatprep.subr.bf16.mxu0 %v1265
        %1293 = vmatpush1.bf16.msra.mxu0 %v1264
        %1294 = vmatprep.subr.bf16.mxu0 %v1267
        %1295 = vmatpush1.bf16.msra.mxu0 %v1266
        %1296 = vmatprep.subr.bf16.mxu0 %v1269
        %1297 = vmatpush1.bf16.msra.mxu0 %v1268
        %1298 = vmatprep.subr.bf16.mxu0 0
        %1299 = vmatpush1.bf16.msra.mxu0 0
        %1300 = vmatprep.subr.bf16.mxu0 0
        %1301 = vmatpush1.bf16.msra.mxu0 0
        %1302 = vmatprep.subr.bf16.mxu0 0
        %1303 = vmatpush1.bf16.msra.mxu0 0
        %1304 = vmatprep.subr.bf16.mxu0 0
        %1305 = vmatpush1.bf16.msra.mxu0 0
        %1306 = vmatprep.subr.bf16.mxu0 0
        %1307 = vmatpush1.bf16.msra.mxu0 0
        %1308 = vmatprep.subr.bf16.mxu0 0
        %1309 = vmatpush1.bf16.msra.mxu0 0
        %1310 = vmatprep.subr.bf16.mxu0 0
        %1311 = vmatpush1.bf16.msra.mxu0 0
        %1312 = vmatprep.subr.bf16.mxu0 0
        %1313 = vmatpush1.bf16.msra.mxu0 0
        %1314 = vmatprep.subr.bf16.mxu0 0
        %1315 = vmatpush1.bf16.msra.mxu0 0
        %1316 = vmatprep.subr.bf16.mxu0 0
        %1317 = vmatpush1.bf16.msra.mxu0 0
        %1318 = vmatprep.subr.bf16.mxu0 0
        %1319 = vmatpush1.bf16.msra.mxu0 0
        %1320 = vmatprep.subr.bf16.mxu0 0
        %1321 = vmatpush1.bf16.msra.mxu0 0
        %1322 = vmatprep.mubr.bf16.mxu0 0
        %1323 = vmatmul.mubr.bf16.gmra.mrb[0].mxu0 %v1279
        %v1324 = vpop.f32.mrb[0].mxu0
        %v1325 = vadd.f32 %v1222, %v1324
        %v1326 = vpop.f32.mrb[0].mxu0
        %v1327 = vadd.f32 %v1223, %v1326
        %v1328 = vpop.f32.mrb[0].mxu0
        %v1329 = vadd.f32 %v1224, %v1328
        %v1330 = vpop.f32.mrb[0].mxu0
        %v1331 = vadd.f32 %v1225, %v1330
        %1332 = vmatprep.mubr.bf16.mxu0 0
        %1333 = vmatmul.mubr.bf16.gmra.mrb[0].mxu0 %v1282
        %v1334 = vpop.f32.mrb[0].mxu0
        %v1335 = vadd.f32 %v1226, %v1334
        %v1336 = vpop.f32.mrb[0].mxu0
        %v1337 = vadd.f32 %v1227, %v1336
        %v1338 = vpop.f32.mrb[0].mxu0
        %v1339 = vadd.f32 %v1228, %v1338
        %v1340 = vpop.f32.mrb[0].mxu0
        %v1341 = vadd.f32 %v1229, %v1340
        %1342 = vmatprep.mubr.bf16.mxu0 0
        %1343 = vmatmul.mubr.bf16.gmra.mrb[0].mxu0 %v1285
        %v1344 = vpop.f32.mrb[0].mxu0
        %v1345 = vadd.f32 %v1230, %v1344
        %v1346 = vpop.f32.mrb[0].mxu0
        %v1347 = vadd.f32 %v1231, %v1346
        %v1348 = vpop.f32.mrb[0].mxu0
        %v1349 = vadd.f32 %v1232, %v1348
        %v1350 = vpop.f32.mrb[0].mxu0
        %v1351 = vadd.f32 %v1233, %v1350
        %1352 = vmatprep.mubr.bf16.mxu0 0
        %1353 = vmatmul.mubr.bf16.gmra.mrb[0].mxu0 %v1288
        %v1354 = vpop.f32.mrb[0].mxu0
        %v1355 = vadd.f32 %v1234, %v1354
        %v1356 = vpop.f32.mrb[0].mxu0
        %v1357 = vadd.f32 %v1235, %v1356
        %v1358 = vpop.f32.mrb[0].mxu0
        %v1359 = vadd.f32 %v1236, %v1358
        %v1360 = vpop.f32.mrb[0].mxu0
        %v1361 = vadd.f32 %v1237, %v1360
        %1362 = vdwg.mxu0
        %v1363 = vmax.f32 %v1325, 0.0
        %v1364 = vmax.f32 %v1327, 0.0
        %v1365 = vmax.f32 %v1329, 0.0
        %v1366 = vmax.f32 %v1331, 0.0
        %v1367 = vmax.f32 %v1335, 0.0
        %v1368 = vmax.f32 %v1337, 0.0
        %v1369 = vmax.f32 %v1339, 0.0
        %v1370 = vmax.f32 %v1341, 0.0
        %v1371 = vmax.f32 %v1345, 0.0
        %v1372 = vmax.f32 %v1347, 0.0
        %v1373 = vmax.f32 %v1349, 0.0
        %v1374 = vmax.f32 %v1351, 0.0
        %v1375 = vmax.f32 %v1355, 0.0
        %v1376 = vmax.f32 %v1357, 0.0
        %v1377 = vmax.f32 %v1359, 0.0
        %v1378 = vmax.f32 %v1361, 0.0
        %1379 = vst [vmem:[%s190] sm:$0xff] %v1363
        %1380 = vst [vmem:[%s190 + $0x8] sm:$0xff] %v1364
        %1381 = vst [vmem:[%s190 + $0x10] sm:$0xff] %v1365
        %1382 = vst [vmem:[%s190 + $0x18] sm:$0xff] %v1366
        %1383 = vst [vmem:[%s190 + $0x20] sm:$0xff] %v1367
        %1384 = vst [vmem:[%s190 + $0x28] sm:$0xff] %v1368
        %1385 = vst [vmem:[%s190 + $0x30] sm:$0xff] %v1369
        %1386 = vst [vmem:[%s190 + $0x38] sm:$0xff] %v1370
        %1387 = vst [vmem:[%s190 + $0x40] sm:$0xff] %v1371
        %1388 = vst [vmem:[%s190 + $0x48] sm:$0xff] %v1372
        %1389 = vst [vmem:[%s190 + $0x50] sm:$0xff] %v1373
        %1390 = vst [vmem:[%s190 + $0x58] sm:$0xff] %v1374
        %1391 = vst [vmem:[%s190 + $0x60] sm:$0xff] %v1375
        %1392 = vst [vmem:[%s190 + $0x68] sm:$0xff] %v1376
        %1393 = vst [vmem:[%s190 + $0x70] sm:$0xff] %v1377
        %1394 = vst [vmem:[%s190 + $0x78] sm:$0xff] %v1378
        %s1395 = sand.u32 %s115, 1
        %s1396 = scalar_lea.sflag [#allocation3], %s1395
        %s1397 = sand.u32 %s115, 1
        %s1398 = smul.addr %s1397, 128
        %s1399 = scalar_lea.vmem [#allocation2], %s1398
        // Predicated region
        $region37: #{tpu_custom_call.1} parent=35 // pred_check
          %p1400 = pneg %p125
        $region38: #{tpu_custom_call.1} parent=35 // pred_check_branch
          %1402 = sbr.rel (%p1400) target = $region40
        $region39: #{tpu_custom_call.1} parent=35 // pred_region
          %s1404 = ssub.s32 2048, 2048
          %1405 = vsyncadd %s1396, %s1404
          %s1406 = smul.addr %s18, 16
          %s1407 = smul.addr %s1406, 128
          %s1408 = scalar_lea.hbm %s4, %s1407
          %s1409 = sshll.u32 %s1399, 4
          %s1410 = int_to_ptr.vmem [resolvable:$true] %s1409
          %1415 = dma.vmem_to_hbm [thread:$0]  %s1410, 2048, %s1408, %s1396, 256, 256, 16
        $region40: #{tpu_custom_call.1} parent=35 // pred_fallthru
          _
      $region36: #{tpu_custom_call.1} parent=5 // pred_fallthru
        _
      %p1416 = scmp.le.s32.totalorder 2, %s13
      // Predicated region
      $region41: #{tpu_custom_call.1} parent=5 // pred_check
        %p1417 = pneg %p1416
      $region42: #{tpu_custom_call.1} parent=5 // pred_check_branch
        %1419 = sbr.rel (%p1417) target = $region44
      $region43: #{tpu_custom_call.1} parent=5 // pred_region
        %s1420 = ssub.s32 %s13, 2
        // Predicated region
        $region45: #{tpu_custom_call.1} parent=43 // pred_check
          %p1421 = pneg %p131
        $region46: #{tpu_custom_call.1} parent=43 // pred_check_branch
          %1423 = sbr.rel (%p1421) target = $region48
        $region47: #{tpu_custom_call.1} parent=43 // pred_region
          %s1424 = sand.u32 %s116, 1
          %s1425 = scalar_lea.sflag [#allocation3], %s1424
          %s1426 = sand.u32 %s116, 1
          %s1427 = smul.addr %s1426, 128
          %s1428 = scalar_lea.vmem [#allocation2], %s1427
          %1429 = dma.done %s1425, 2048
        $region48: #{tpu_custom_call.1} parent=43 // pred_fallthru
          _
      $region44: #{tpu_custom_call.1} parent=5 // pred_fallthru
        _
    $region6: #{tpu_custom_call.1} parent=1 // loop_footer
      %s17 = sadd.s32 1, %s13
    $region7: #{tpu_custom_call.1} parent=1 // loop_footer_branch
      %12 = sbr.rel target = $region3
    $region8: #{tpu_custom_call.1} parent=1 // loop_exit
      _
    %1430 = vsyncpa [#allocation3], 1
    %s1431 = scalar_lea.sflag [#allocation3], 1
    %1432 = vsyncpa %s1431, 1

</llo_original>
